<compile_context>
chip_gen: v7x
topology: tpu7x:2x2x1
jax: 0.10.0
libtpu: 0.0.40
codegen_flags: <defaults>
</compile_context>

<pallas_src>
import numpy as np

import jax
import jax.numpy as jnp
from jax.experimental import pallas as pl
from jax.experimental.pallas import tpu as pltpu


# --------------------------------------------------------------------------
# Host-side construction of the positional-encoding table (mirrors __init__).
# --------------------------------------------------------------------------
def build_position_encoding_table(model_dim, max_visit_len):
    pe = np.array(
        [[pos / np.power(10000, 2.0 * (j // 2) / model_dim)
          for j in range(model_dim)]
         for pos in range(max_visit_len)]
    )
    pe[:, 0::2] = np.sin(pe[:, 0::2])
    pe[:, 1::2] = np.cos(pe[:, 1::2])
    pe = pe.astype(np.float32)
    pad_row = np.zeros((1, model_dim), dtype=np.float32)
    # padded table: row 0 = zeros, row p (p >= 1) = PE for position p
    return jnp.asarray(np.concatenate([pad_row, pe], axis=0))


# --------------------------------------------------------------------------
# Kernel: one batch block per grid step.
# --------------------------------------------------------------------------
def _pos_enc_kernel(len_ref, table_ref, pe_ref):
    # len_ref:   (B,)       int32   SMEM (scalar prefetch; full lengths array)
    # table_ref: (L+1, D)   float32 VMEM (full padded table; resident, constant index_map)
    # pe_ref:    (TB, L, D)         VMEM output block for this batch tile
    TB, L, D = pe_ref.shape
    base = pl.program_id(0) * TB

    # PE rows for positions 1..L (row 0 of the padded table is the zero pad row).
    rows = table_ref[pl.ds(1, L), :]                                # (L, D)
    col = jax.lax.broadcasted_iota(jnp.int32, (L, 1), 0)            # 0..L-1

    # One lane-dense (L, D) select + store per batch row in the tile.
    for i in range(TB):
        length = len_ref[base + i]                                  # scalar from SMEM
        pe_ref[i] = jnp.where(col < length, rows, 0.0).astype(pe_ref.dtype)


def _pick_batch_tile(batch, seq_len, model_dim, itemsize, vmem_budget_bytes=8 << 20):
    """Largest divisor of `batch` whose double-buffered output block fits the budget,
    stopping once the flattened row count per block reaches ~512 (HBM-store roofline)."""
    best = 1
    for tb in range(1, batch + 1):
        if batch % tb:
            continue
        if 2 * tb * seq_len * model_dim * itemsize > vmem_budget_bytes:
            break
        best = tb
        if tb * seq_len >= 512:
            break
    return best


def positional_encoding_forward(input_len, padded_table, max_visit_len,
                                out_dtype=jnp.float32):
    """JAX/Pallas equivalent of PositionalEncoding.forward.

    input_len:    (B,) int array of visit lengths (assumed <= max_visit_len, as in torch).
    padded_table: (max_visit_len + 1, model_dim) float32 table (row 0 = zero pad row),
                  as built in __init__.
    Returns (pe_out (B, L, D) out_dtype, input_pos (B, L) int32).
    """
    B = int(input_len.shape[0])
    Lp1, D = padded_table.shape
    L = int(max_visit_len)
    assert Lp1 == L + 1

    lens = input_len.astype(jnp.int32)

    # input_pos is a trivial iota+where; computing it here avoids a sub-128-lane
    # int32 output (masked vst.msk) inside the kernel.  XLA fuses this for free.
    iota = jnp.arange(1, L + 1, dtype=jnp.int32)[None, :]
    input_pos = jnp.where(iota <= lens[:, None], iota, 0)

    TB = _pick_batch_tile(B, L, D, jnp.dtype(out_dtype).itemsize)
    grid = (B // TB,)

    pe_out = pl.pallas_call(
        _pos_enc_kernel,
        out_shape=jax.ShapeDtypeStruct((B, L, D), out_dtype),
        grid_spec=pltpu.PrefetchScalarGridSpec(
            num_scalar_prefetch=1,               # lengths -> SMEM, visible to index_maps
            grid=grid,
            in_specs=[
                # Full padded table, same block for every grid step -> stays resident.
                pl.BlockSpec((Lp1, D), lambda b, lens_ref: (0, 0)),
            ],
            out_specs=pl.BlockSpec((TB, L, D), lambda b, lens_ref: (b, 0, 0)),
        ),
        compiler_params=pltpu.CompilerParams(
            dimension_semantics=("parallel",),   # shard batch grid across TCs (v7x)
        ),
    )(lens, padded_table)

    return pe_out, input_pos


# --------------------------------------------------------------------------
# Demo / self-check
# --------------------------------------------------------------------------
if __name__ == "__main__":
    MODEL_DIM = 128        # lane-dense last dim (multiple of 128)
    MAX_VISIT_LEN = 16
    BATCH = 2

    rng = jax.random.PRNGKey(0)
    input_len = jax.random.randint(
        rng, (BATCH,), minval=1, maxval=MAX_VISIT_LEN + 1, dtype=jnp.int32
    )

    padded_table = build_position_encoding_table(MODEL_DIM, MAX_VISIT_LEN)

    pe_out, input_pos = positional_encoding_forward(
        input_len, padded_table, MAX_VISIT_LEN
    )
    jax.block_until_ready((pe_out, input_pos))

    # Pure-JAX reference (direct transcription of the PyTorch forward).
    ref_iota = jnp.arange(1, MAX_VISIT_LEN + 1, dtype=jnp.int32)[None, :]
    ref_pos = jnp.where(ref_iota <= input_len[:, None], ref_iota, 0)
    ref_pe = padded_table[ref_pos]  # gather, incl. zero pad row for index 0

    assert pe_out.shape == (BATCH, MAX_VISIT_LEN, MODEL_DIM)
    assert input_pos.shape == (BATCH, MAX_VISIT_LEN)
    assert bool(jnp.array_equal(input_pos, ref_pos))
    assert bool(jnp.allclose(pe_out, ref_pe))

    print("KERNEL_OK")
</pallas_src>

<mosaic_0001>
module attributes {stable_mosaic.version = 11 : i64} {
  func.func @_pos_enc_kernel(%arg0: i32, %arg1: memref<2xi32, #tpu.memory_space<smem>>, %arg2: memref<17x128xf32, #tpu.memory_space<vmem>>, %arg3: memref<2x16x128xf32, #tpu.memory_space<vmem>>) attributes {dimension_semantics = [#tpu.dimension_semantics<parallel>], iteration_bounds = array<i64: 1>, scalar_prefetch = 1 : i64, scratch_operands = 0 : i64, tpu.core_type = #tpu.core_type<tc>, window_params = [{pipeline_mode = #tpu.pipeline_mode<synchronous>, transform_indices = @transform_0, window_bounds = array<i64: 17, 128>}, {transform_indices = @transform_1, window_bounds = array<i64: 2, 16, 128>}]} {
    %c2_i32 = arith.constant 2 : i32
    %0 = arith.muli %arg0, %c2_i32 : i32
    %c1 = arith.constant 1 : index
    %c0 = arith.constant 0 : index
    %1 = vector.load %arg2[%c1, %c0] : memref<17x128xf32, #tpu.memory_space<vmem>>, vector<16x128xf32>
    %2 = tpu.iota {dimensions = array<i32: 0>} : vector<16x1xi32>
    %c0_i32 = arith.constant 0 : i32
    %3 = arith.addi %0, %c0_i32 : i32
    %4 = arith.index_cast %3 : i32 to index
    %5 = memref.load %arg1[%4] : memref<2xi32, #tpu.memory_space<smem>>
    %6 = vector.broadcast %5 : i32 to vector<16x1xi32>
    %7 = arith.cmpi slt, %2, %6 : vector<16x1xi32>
    %cst = arith.constant 0.000000e+00 : f32
    %8 = vector.shape_cast %7 : vector<16x1xi1> to vector<16x1xi1>
    %9 = vector.broadcast %8 : vector<16x1xi1> to vector<16x128xi1>
    %10 = vector.broadcast %cst : f32 to vector<16x128xf32>
    %11 = arith.select %9, %1, %10 : vector<16x128xi1>, vector<16x128xf32>
    %c0_0 = arith.constant 0 : index
    %c0_1 = arith.constant 0 : index
    %c0_2 = arith.constant 0 : index
    %12 = vector.load %arg3[%c0_0, %c0_1, %c0_2] : memref<2x16x128xf32, #tpu.memory_space<vmem>>, vector<1x16x128xf32>
    %13 = vector.shape_cast %12 : vector<1x16x128xf32> to vector<16x128xf32>
    %14 = vector.shape_cast %11 : vector<16x128xf32> to vector<1x16x128xf32>
    tpu.vector_store %arg3[%c0_0, %c0_1, %c0_2], %14 {strides = array<i32>} : memref<2x16x128xf32, #tpu.memory_space<vmem>>, vector<1x16x128xf32>,
    %c1_i32 = arith.constant 1 : i32
    %15 = arith.addi %0, %c1_i32 : i32
    %16 = arith.index_cast %15 : i32 to index
    %17 = memref.load %arg1[%16] : memref<2xi32, #tpu.memory_space<smem>>
    %18 = vector.broadcast %17 : i32 to vector<16x1xi32>
    %19 = arith.cmpi slt, %2, %18 : vector<16x1xi32>
    %cst_3 = arith.constant 0.000000e+00 : f32
    %20 = vector.shape_cast %19 : vector<16x1xi1> to vector<16x1xi1>
    %21 = vector.broadcast %20 : vector<16x1xi1> to vector<16x128xi1>
    %22 = vector.broadcast %cst_3 : f32 to vector<16x128xf32>
    %23 = arith.select %21, %1, %22 : vector<16x128xi1>, vector<16x128xf32>
    %c1_4 = arith.constant 1 : index
    %c0_5 = arith.constant 0 : index
    %c0_6 = arith.constant 0 : index
    %24 = vector.load %arg3[%c1_4, %c0_5, %c0_6] : memref<2x16x128xf32, #tpu.memory_space<vmem>>, vector<1x16x128xf32>
    %25 = vector.shape_cast %24 : vector<1x16x128xf32> to vector<16x128xf32>
    %26 = vector.shape_cast %23 : vector<16x128xf32> to vector<1x16x128xf32>
    tpu.vector_store %arg3[%c1_4, %c0_5, %c0_6], %26 {strides = array<i32>} : memref<2x16x128xf32, #tpu.memory_space<vmem>>, vector<1x16x128xf32>,
    return
  }
  func.func @transform_0(%arg0: i32, %arg1: memref<2xi32, #tpu.memory_space<smem>>) -> (i32, i32) {
    %c0_i32 = arith.constant 0 : i32
    %c0_i32_0 = arith.constant 0 : i32
    %c0_i32_1 = arith.constant 0 : i32
    return %c0_i32, %c0_i32_0 : i32, i32
  }
  func.func @transform_1(%arg0: i32, %arg1: memref<2xi32, #tpu.memory_space<smem>>) -> (i32, i32, i32) {
    %c0_i32 = arith.constant 0 : i32
    %c0_i32_0 = arith.constant 0 : i32
    %c0_i32_1 = arith.constant 0 : i32
    return %arg0, %c0_i32, %c0_i32_0 : i32, i32, i32
  }
}

</mosaic_0001>

<llo_original>
// kernel: tpu_custom_call.1
$region0: #{tpu_custom_call.1}
  #allocation0 [shape = 'u32[]', space=smem, size = 0x4, offset = 0x4, fixed_abs, tag = 'smem constant byte address 0x4 - core index']
  #allocation1 [shape = 'u32[144,128]{1,0:T(1,128)}', space=vmem, size = 0x12000, scoped, tag = 'internal scratch']
  #allocation2 [shape = 's32[1]{0}', space=sflag, size = 0x4, scoped, tag = 'scoped memory for tpu_custom_call.1']
  #allocation3 [shape = 'u8[512]{0}', space=smem, size = 0x200, scoped, tag = 'prefetched SMEM operand 0']
  %s0 = inlined_call_operand.hbm [shape: s32[2], index: 0, kind: input, shape index: {}]
  %s1 = inlined_call_operand.hbm [shape: f32[17,128], index: 1, kind: input, shape index: {}]
  %s2 = inlined_call_operand.hbm [shape: f32[2,16,128], index: 2, kind: output, shape index: {}]
  %s3 = sld [smem:[#allocation0]]
  $region18: #{tpu_custom_call.1} parent=0
    _
  %s5 = ssub.s32 1, %s3
  %s6 = scalar_select 0, %s5, %s3
  %8 = dma.hbm_to_smem %s0, 16, [#allocation3], [#allocation2]
  %9 = dma.done [#allocation2], 16
  %10 = sfence
  $region1: #{tpu_custom_call.1} parent=0
    #allocation4 [shape = 'u8[12288]{0}', space=vmem, size = 0x3000, scoped, tag = 'input window, operand 1, single buffered']
    #allocation5 [shape = 's32[1]{0}', space=sflag, size = 0x4, scoped, tag = 'scoped memory for tpu_custom_call.1']
    #allocation6 [shape = 's32[1]{0}', space=sflag, size = 0x4, scoped, tag = 'scoped memory for tpu_custom_call.1']
    #allocation7 [shape = 'u8[16384]{0}', space=vmem, size = 0x4000, scoped, tag = 'output window, operand 0, single buffered']
    %11 = vsyncpa [#allocation5], 0
    %12 = vsyncpa [#allocation6], 0
    // Predicated region
    $region2: #{tpu_custom_call.1} parent=1 // pred_check
      _
    $region3: #{tpu_custom_call.1} parent=1 // pred_check_branch
      %14 = sbr.rel (0) target = $region5
    $region4: #{tpu_custom_call.1} parent=1 // pred_region
      %s16 = ssub.s32 384, 384
      %17 = vsyncadd [#allocation5], %s16
      %s18 = sshll.u32 [#allocation4], 4
      %s19 = int_to_ptr.vmem [resolvable:$true] %s18
      %24 = dma.hbm_to_vmem [thread:$0]  %s1, 384, %s19, [#allocation5], 128, 128, 8
    $region5: #{tpu_custom_call.1} parent=1 // pred_fallthru
      _
    // Predicated region
    $region6: #{tpu_custom_call.1} parent=1 // pred_check
      _
    $region7: #{tpu_custom_call.1} parent=1 // pred_check_branch
      %26 = sbr.rel (0) target = $region9
    $region8: #{tpu_custom_call.1} parent=1 // pred_region
      %27 = dma.done [#allocation5], 384
    $region9: #{tpu_custom_call.1} parent=1 // pred_fallthru
      _
    %s28 = smul.u32 0, 2
    %v29 = vld [vmem:[#allocation4 + $0x1] sm:$0xff]
    %v30 = vld [vmem:[#allocation4 + $0x9] sm:$0xff]
    %v31 = vlaneseq
    %v32 = vshrl.u32 %v31, 7
    %v33 = vadd.s32 %v32, 8
    %s34 = sld [smem:[#allocation3 + %s28]]
    %v35 = vstv %s34
    %vm36 = vcmp.lt.s32.totalorder %v32, %v35
    %vm37 = vcmp.lt.s32.totalorder %v33, %v35
    %v38 = vsel %vm36, 1, 0
    %v39 = vsel %vm37, 1, 0
    %vm40 = vcmp.eq.s32.totalorder %v38, 1
    %vm41 = vcmp.eq.s32.totalorder %v39, 1
    %v42 = vsel %vm40, %v29, 0.0
    %v43 = vsel %vm41, %v30, 0.0
    %44 = vst [vmem:[#allocation7] sm:$0xff] %v42
    %45 = vst [vmem:[#allocation7 + $0x8] sm:$0xff] %v43
    %s46 = sadd.s32 %s28, 1
    %s47 = sld [smem:[#allocation3 + %s46]]
    %v48 = vstv %s47
    %vm49 = vcmp.lt.s32.totalorder %v32, %v48
    %vm50 = vcmp.lt.s32.totalorder %v33, %v48
    %v51 = vsel %vm49, 1, 0
    %v52 = vsel %vm50, 1, 0
    %vm53 = vcmp.eq.s32.totalorder %v51, 1
    %vm54 = vcmp.eq.s32.totalorder %v52, 1
    %v55 = vsel %vm53, %v29, 0.0
    %v56 = vsel %vm54, %v30, 0.0
    %s57 = scalar_lea.vmem [#allocation7], 16
    %58 = vst [vmem:[%s57] sm:$0xff] %v55
    %59 = vst [vmem:[%s57 + $0x8] sm:$0xff] %v56
    // Predicated region
    $region10: #{tpu_custom_call.1} parent=1 // pred_check
      _
    $region11: #{tpu_custom_call.1} parent=1 // pred_check_branch
      %61 = sbr.rel (0) target = $region13
    $region12: #{tpu_custom_call.1} parent=1 // pred_region
      %s63 = ssub.s32 512, 512
      %64 = vsyncadd [#allocation6], %s63
      %s65 = sshll.u32 [#allocation7], 4
      %s66 = int_to_ptr.vmem [resolvable:$true] %s65
      %71 = dma.vmem_to_hbm [thread:$0]  %s66, 512, %s2, [#allocation6], 128, 128, 8
    $region13: #{tpu_custom_call.1} parent=1 // pred_fallthru
      _
    // Predicated region
    $region14: #{tpu_custom_call.1} parent=1 // pred_check
      _
    $region15: #{tpu_custom_call.1} parent=1 // pred_check_branch
      %73 = sbr.rel (0) target = $region17
    $region16: #{tpu_custom_call.1} parent=1 // pred_region
      %74 = dma.done [#allocation6], 512
    $region17: #{tpu_custom_call.1} parent=1 // pred_fallthru
      _
    %75 = vsyncpa [#allocation5], 1
    %76 = vsyncpa [#allocation6], 1

</llo_original>
